<compile_context>
chip_gen: v7x
topology: tpu7x:2x2x1
jax: 0.10.0
libtpu: 0.0.40
codegen_flags: <defaults>
</compile_context>

<pallas_src>
import jax
import jax.numpy as jnp
from jax import lax
from jax.experimental import pallas as pl
from jax.experimental.pallas import tpu as pltpu


def _round_up(x, m):
    return ((x + m - 1) // m) * m


# ----------------------------------------------------------------------------
# Kernel: one (tm, tn) output tile = pure matmul of pre-scaled bf16 operands.
# ----------------------------------------------------------------------------
def _coco_matmul_kernel(feat_ref, centers_ref, out_ref):
    """feat_ref:    (tm, D)  bf16  -- rows pre-scaled by alpha/||feat_row||
       centers_ref: (tn, D)  bf16  -- rows pre-scaled by 1/||center_row||
       out_ref:     (tm, tn) f32
    Contraction over dim 1 of both operands -> no explicit transpose."""
    out_ref[...] = lax.dot_general(
        feat_ref[...],
        centers_ref[...],
        dimension_numbers=(((1,), (1,)), ((), ())),
        preferred_element_type=jnp.float32,
    )


# ----------------------------------------------------------------------------
# Tile selection under a v7x-safe VMEM working-set budget.
# ----------------------------------------------------------------------------
_VMEM_WORKING_SET_BUDGET = 48 * 1024 * 1024   # leave headroom on v7x (64 MiB)


def _choose_tiles(batch, num_classes, feat_dim):
    # bf16 operands pack 16 rows per sublane tile -> align batch tiles to 16.
    bp16 = _round_up(batch, 16)
    cp128 = _round_up(num_classes, 128)

    # Class tile: lane-dense multiple of 128, target 512, balanced across
    # tiles so class padding stays minimal (centers is the streaming operand).
    target_tn = 512
    nct = -(-cp128 // min(target_tn, cp128))          # number of class tiles
    tn = _round_up(-(-cp128 // nct), 128)
    cp = nct * tn

    # Batch tile: as large as the working-set budget allows.
    #   working set ~= 2*tm*D*2 (feat bf16, dbl-buffered)
    #                + 2*tn*D*2 (centers bf16, dbl-buffered)
    #                + 2*tm*tn*4 (f32 output, dbl-buffered)
    fixed = 2 * tn * feat_dim * 2
    per_tm = 2 * feat_dim * 2 + 2 * tn * 4
    tm_cap = max(16, ((_VMEM_WORKING_SET_BUDGET - fixed) // per_tm) // 16 * 16)

    if bp16 <= tm_cap:
        tm, bp = bp16, bp16          # centers is read exactly once per forward
    else:
        nbt = -(-bp16 // tm_cap)     # balanced batch tiles
        tm = _round_up(-(-bp16 // nbt), 16)
        bp = nbt * tm
    return tm, tn, bp, cp


# ----------------------------------------------------------------------------
# Wrapper: matches COCOLoss.forward (logits only).
# ----------------------------------------------------------------------------
def coco_loss_forward(feat, centers, alpha=6.25):
    """feat: (batch, feat_dim), centers: (num_classes, feat_dim)
    -> logits (batch, num_classes)."""
    batch, feat_dim = feat.shape
    num_classes, feat_dim_c = centers.shape
    assert feat_dim == feat_dim_c, "feat_dim mismatch between feat and centers"

    feat = feat.astype(jnp.float32)
    centers = centers.astype(jnp.float32)

    # Row inverse norms in f32 (EUP rsqrt). The tiny floor only protects
    # all-zero rows (PyTorch would yield NaN there); real rows are unaffected.
    inv_fnorm = lax.rsqrt(
        jnp.maximum(jnp.sum(feat * feat, axis=-1, keepdims=True), 1e-30))
    inv_cnorm = lax.rsqrt(
        jnp.maximum(jnp.sum(centers * centers, axis=-1, keepdims=True), 1e-30))

    # Fold all scaling (alpha, both row norms) into the f32->bf16 cast passes
    # that the MXU operands need anyway: the kernel becomes a pure matmul.
    feat_bf16 = (feat * (alpha * inv_fnorm)).astype(jnp.bfloat16)
    centers_bf16 = (centers * inv_cnorm).astype(jnp.bfloat16)

    tm, tn, bp, cp = _choose_tiles(batch, num_classes, feat_dim)

    # Pads fuse with the normalize+cast passes above (no extra HBM sweeps).
    feat_p = jnp.pad(feat_bf16, ((0, bp - batch), (0, 0)))
    centers_p = jnp.pad(centers_bf16, ((0, cp - num_classes), (0, 0)))

    # Class axis innermost: feat tile stays resident while centers streams.
    grid = (bp // tm, cp // tn)

    # Derive the VMEM limit from the actual working set; cap below v7x's
    # 64 MiB physical VMEM while allowing large tiles on v5e/v6e (128 MiB).
    working_set = (2 * tm * feat_dim * 2
                   + 2 * tn * feat_dim * 2
                   + 2 * tm * tn * 4)
    vmem_limit = int(min(56 * 1024 * 1024,
                         max(32 * 1024 * 1024, working_set + 8 * 1024 * 1024)))

    out = pl.pallas_call(
        _coco_matmul_kernel,
        out_shape=jax.ShapeDtypeStruct((bp, cp), jnp.float32),
        grid_spec=pltpu.PrefetchScalarGridSpec(
            num_scalar_prefetch=0,
            grid=grid,
            in_specs=[
                # feat tile is resident across the (inner) class axis.
                pl.BlockSpec((tm, feat_dim), lambda i, j: (i, 0)),
                # centers tiles stream from HBM.
                # (If DMA is still exposed after enlarging tm, add
                #  pipeline_mode=pl.Buffered(3) here and re-measure.)
                pl.BlockSpec((tn, feat_dim), lambda i, j: (j, 0)),
            ],
            out_specs=pl.BlockSpec((tm, tn), lambda i, j: (i, j)),
        ),
        compiler_params=pltpu.CompilerParams(
            # Both grid axes are independent -> shard across v7x's 2 TCs
            # (when tm == full batch the class axis carries the parallelism).
            dimension_semantics=("parallel", "parallel"),
            vmem_limit_bytes=vmem_limit,
        ),
    )(feat_p, centers_p)

    return out[:batch, :num_classes]


if __name__ == "__main__":
    # Small shapes consistent with the module: batch=8, feat_dim=32, classes=16.
    batch, feat_dim, num_classes = 8, 32, 16
    alpha = 6.25

    key = jax.random.PRNGKey(0)
    k_feat, k_centers = jax.random.split(key)

    feat = jax.random.normal(k_feat, (batch, feat_dim), dtype=jnp.float32)
    # Deterministic stand-in for nn.Parameter(torch.randn(num_classes, feat_dim)).
    centers = jax.random.normal(k_centers, (num_classes, feat_dim), dtype=jnp.float32)

    logits = coco_loss_forward(feat, centers, alpha=alpha)
    jax.block_until_ready(logits)

    # Reference in plain f32 JAX. The kernel feeds bf16 operands to the MXU
    # (f32 accumulation), so allow bf16-level tolerance.
    nfeat = feat / jnp.linalg.norm(feat, axis=-1, keepdims=True)
    ncenters = centers / jnp.linalg.norm(centers, axis=-1, keepdims=True)
    ref = (alpha * nfeat) @ ncenters.T

    assert logits.shape == ref.shape, "shape mismatch vs reference"
    assert jnp.allclose(logits, ref, atol=5e-2, rtol=5e-2), "mismatch vs reference"

    print("KERNEL_OK")
</pallas_src>

<mosaic_0001>
module attributes {stable_mosaic.version = 11 : i64} {
  func.func @_coco_matmul_kernel(%arg0: i32, %arg1: i32, %arg2: memref<16x32xbf16, #tpu.memory_space<vmem>>, %arg3: memref<128x32xbf16, #tpu.memory_space<vmem>>, %arg4: memref<16x128xf32, #tpu.memory_space<vmem>>) attributes {dimension_semantics = [#tpu.dimension_semantics<parallel>, #tpu.dimension_semantics<parallel>], iteration_bounds = array<i64: 1, 1>, scalar_prefetch = 0 : i64, scratch_operands = 0 : i64, tpu.core_type = #tpu.core_type<tc>, window_params = [{transform_indices = @transform_0, window_bounds = array<i64: 16, 32>}, {transform_indices = @transform_1, window_bounds = array<i64: 128, 32>}, {transform_indices = @transform_2, window_bounds = array<i64: 16, 128>}]} {
    %c0 = arith.constant 0 : index
    %c0_0 = arith.constant 0 : index
    %0 = vector.load %arg2[%c0, %c0_0] : memref<16x32xbf16, #tpu.memory_space<vmem>>, vector<16x32xbf16>
    %c0_1 = arith.constant 0 : index
    %c0_2 = arith.constant 0 : index
    %1 = vector.load %arg3[%c0_1, %c0_2] : memref<128x32xbf16, #tpu.memory_space<vmem>>, vector<128x32xbf16>
    %cst = arith.constant dense<0.000000e+00> : vector<16x128xf32>
    %2 = tpu.matmul %0, %1, %cst {dimension_numbers = #tpu.dot_dimension_numbers<[1], [1], [0], [0], [0, 0, 1, 0], [], []>} : vector<16x32xbf16>, vector<128x32xbf16>, vector<16x128xf32> -> vector<16x128xf32>
    %c0_3 = arith.constant 0 : index
    %c0_4 = arith.constant 0 : index
    %3 = vector.load %arg4[%c0_3, %c0_4] : memref<16x128xf32, #tpu.memory_space<vmem>>, vector<16x128xf32>
    tpu.vector_store %arg4[%c0_3, %c0_4], %2 {strides = array<i32>} : memref<16x128xf32, #tpu.memory_space<vmem>>, vector<16x128xf32>,
    return
  }
  func.func @transform_0(%arg0: i32, %arg1: i32) -> (i32, i32) {
    %c0_i32 = arith.constant 0 : i32
    %c0_i32_0 = arith.constant 0 : i32
    return %arg0, %c0_i32 : i32, i32
  }
  func.func @transform_1(%arg0: i32, %arg1: i32) -> (i32, i32) {
    %c0_i32 = arith.constant 0 : i32
    %c0_i32_0 = arith.constant 0 : i32
    return %arg1, %c0_i32 : i32, i32
  }
  func.func @transform_2(%arg0: i32, %arg1: i32) -> (i32, i32) {
    %c0_i32 = arith.constant 0 : i32
    return %arg0, %arg1 : i32, i32
  }
}

</mosaic_0001>

<llo_original>
// kernel: tpu_custom_call.1
$region0: #{tpu_custom_call.1}
  #allocation0 [shape = 'u32[]', space=smem, size = 0x4, offset = 0x4, fixed_abs, tag = 'smem constant byte address 0x4 - core index']
  #allocation1 [shape = 'u32[144,128]{1,0:T(1,128)}', space=vmem, size = 0x12000, scoped, tag = 'internal scratch']
  %s0 = inlined_call_operand.vmem [shape: bf16[16,32], index: 0, kind: input, shape index: {}]
  %s1 = inlined_call_operand.vmem [shape: bf16[128,32], index: 1, kind: input, shape index: {}]
  %s2 = inlined_call_operand.hbm [shape: f32[16,128], index: 2, kind: output, shape index: {}]
  %s3 = sld [smem:[#allocation0]]
  $region18: #{tpu_custom_call.1} parent=0
    _
  %s5 = ssub.s32 1, %s3
  %s6 = scalar_select 0, %s5, %s3
  $region1: #{tpu_custom_call.1} parent=0
    #allocation2 [shape = 'u8[8192]{0}', space=vmem, size = 0x2000, scoped, tag = 'output window, operand 0, single buffered']
    #allocation3 [shape = 's32[1]{0}', space=sflag, size = 0x4, scoped, tag = 'scoped memory for tpu_custom_call.1']
    %7 = vsyncpa [#allocation3], 0
    // Predicated region
    $region2: #{tpu_custom_call.1} parent=1 // pred_check
      _
    $region3: #{tpu_custom_call.1} parent=1 // pred_check_branch
      %9 = sbr.rel (0) target = $region5
    $region4: #{tpu_custom_call.1} parent=1 // pred_region
      _
    $region5: #{tpu_custom_call.1} parent=1 // pred_fallthru
      _
    // Predicated region
    $region6: #{tpu_custom_call.1} parent=1 // pred_check
      _
    $region7: #{tpu_custom_call.1} parent=1 // pred_check_branch
      %11 = sbr.rel (0) target = $region9
    $region8: #{tpu_custom_call.1} parent=1 // pred_region
      _
    $region9: #{tpu_custom_call.1} parent=1 // pred_fallthru
      _
    %v13 = vld [vmem:[%s0] sm:$0xf]
    %v14 = vld [vmem:[%s0 + $0x4] sm:$0xf]
    %v15 = vld [vmem:[%s1] sm:$0xf]
    %v16 = vld [vmem:[%s1 + $0x4] sm:$0xf]
    %v17 = vld [vmem:[%s1 + $0x8] sm:$0xf]
    %v18 = vld [vmem:[%s1 + $0xc] sm:$0xf]
    %v19 = vld [vmem:[%s1 + $0x10] sm:$0xf]
    %v20 = vld [vmem:[%s1 + $0x14] sm:$0xf]
    %v21 = vld [vmem:[%s1 + $0x18] sm:$0xf]
    %v22 = vld [vmem:[%s1 + $0x1c] sm:$0xf]
    %v23 = vld [vmem:[%s1 + $0x20] sm:$0xf]
    %v24 = vld [vmem:[%s1 + $0x24] sm:$0xf]
    %v25 = vld [vmem:[%s1 + $0x28] sm:$0xf]
    %v26 = vld [vmem:[%s1 + $0x2c] sm:$0xf]
    %v27 = vld [vmem:[%s1 + $0x30] sm:$0xf]
    %v28 = vld [vmem:[%s1 + $0x34] sm:$0xf]
    %v29 = vld [vmem:[%s1 + $0x38] sm:$0xf]
    %v30 = vld [vmem:[%s1 + $0x3c] sm:$0xf]
    %v33 = vunpack.c.l.b16 %v13
    %v34 = vunpack.c.l.b16 %v14
    %v35 = vpack.c.b16 %v34, %v33
    %v52 = vunpack.c.l.b16 %v15
    %v53 = vunpack.c.l.b16 %v16
    %v54 = vunpack.c.l.b16 %v17
    %v55 = vunpack.c.l.b16 %v18
    %v56 = vunpack.c.l.b16 %v19
    %v57 = vunpack.c.l.b16 %v20
    %v58 = vunpack.c.l.b16 %v21
    %v59 = vunpack.c.l.b16 %v22
    %v60 = vunpack.c.l.b16 %v23
    %v61 = vunpack.c.l.b16 %v24
    %v62 = vunpack.c.l.b16 %v25
    %v63 = vunpack.c.l.b16 %v26
    %v64 = vunpack.c.l.b16 %v27
    %v65 = vunpack.c.l.b16 %v28
    %v66 = vunpack.c.l.b16 %v29
    %v67 = vunpack.c.l.b16 %v30
    %v68 = vpack.c.b16 %v53, %v52
    %v69 = vpack.c.b16 %v55, %v54
    %v70 = vpack.c.b16 %v57, %v56
    %v71 = vpack.c.b16 %v59, %v58
    %v72 = vpack.c.b16 %v61, %v60
    %v73 = vpack.c.b16 %v63, %v62
    %v74 = vpack.c.b16 %v65, %v64
    %v75 = vpack.c.b16 %v67, %v66
    %vm76 = vcmask 261120
    %v78 = vsel %vm76, %v35, 0
    %v81 = vsel %vm76, %v68, 0
    %v84 = vsel %vm76, %v69, 0
    %v87 = vsel %vm76, %v70, 0
    %v90 = vsel %vm76, %v71, 0
    %v93 = vsel %vm76, %v72, 0
    %v96 = vsel %vm76, %v73, 0
    %v99 = vsel %vm76, %v74, 0
    %v102 = vsel %vm76, %v75, 0
    %104 = vmatprep.subr.bf16.mxu0 0
    %105 = vmatpush1.bf16.xpose.msra.mxu0 %v81
    %106 = vmatprep.subr.bf16.mxu0 0
    %107 = vmatpush1.bf16.xpose.msra.mxu0 %v84
    %108 = vmatprep.subr.bf16.mxu0 0
    %109 = vmatpush1.bf16.xpose.msra.mxu0 %v87
    %110 = vmatprep.subr.bf16.mxu0 0
    %111 = vmatpush1.bf16.xpose.msra.mxu0 %v90
    %112 = vmatprep.subr.bf16.mxu0 0
    %113 = vmatpush1.bf16.xpose.msra.mxu0 %v93
    %114 = vmatprep.subr.bf16.mxu0 0
    %115 = vmatpush1.bf16.xpose.msra.mxu0 %v96
    %116 = vmatprep.subr.bf16.mxu0 0
    %117 = vmatpush1.bf16.xpose.msra.mxu0 %v99
    %118 = vmatprep.subr.bf16.mxu0 0
    %119 = vmatpush1.bf16.xpose.msra.mxu0 %v102
    %120 = vmatprep.subr.bf16.mxu0 0
    %121 = vmatpush1.bf16.xpose.msra.mxu0 0
    %122 = vmatprep.subr.bf16.mxu0 0
    %123 = vmatpush1.bf16.xpose.msra.mxu0 0
    %124 = vmatprep.subr.bf16.mxu0 0
    %125 = vmatpush1.bf16.xpose.msra.mxu0 0
    %126 = vmatprep.subr.bf16.mxu0 0
    %127 = vmatpush1.bf16.xpose.msra.mxu0 0
    %128 = vmatprep.subr.bf16.mxu0 0
    %129 = vmatpush1.bf16.xpose.msra.mxu0 0
    %130 = vmatprep.subr.bf16.mxu0 0
    %131 = vmatpush1.bf16.xpose.msra.mxu0 0
    %132 = vmatprep.subr.bf16.mxu0 0
    %133 = vmatpush1.bf16.xpose.msra.mxu0 0
    %134 = vmatprep.subr.bf16.mxu0 0
    %135 = vmatpush1.bf16.xpose.msra.mxu0 0
    %136 = vmatprep.mubr.bf16.mxu0 0
    %137 = vmatmul.mubr.bf16.gmra.mrb[0].mxu0 %v78
    %v138 = vpop.f32.mrb[0].mxu0
    %v139 = vadd.f32 0.0, %v138
    %v140 = vpop.f32.mrb[0].mxu0
    %v141 = vpop.f32.mrb[0].mxu0
    %v142 = vadd.f32 0.0, %v141
    %v143 = vpop.f32.mrb[0].mxu0
    %144 = vdwg.mxu0
    %145 = vst [vmem:[#allocation2] sm:$0xff] %v139
    %146 = vst [vmem:[#allocation2 + $0x8] sm:$0xff] %v142
    // Predicated region
    $region10: #{tpu_custom_call.1} parent=1 // pred_check
      _
    $region11: #{tpu_custom_call.1} parent=1 // pred_check_branch
      %148 = sbr.rel (0) target = $region13
    $region12: #{tpu_custom_call.1} parent=1 // pred_region
      %s150 = ssub.s32 256, 256
      %151 = vsyncadd [#allocation3], %s150
      %s152 = sshll.u32 [#allocation2], 4
      %s153 = int_to_ptr.vmem [resolvable:$true] %s152
      %158 = dma.vmem_to_hbm [thread:$0]  %s153, 256, %s2, [#allocation3], 128, 128, 8
    $region13: #{tpu_custom_call.1} parent=1 // pred_fallthru
      _
    // Predicated region
    $region14: #{tpu_custom_call.1} parent=1 // pred_check
      _
    $region15: #{tpu_custom_call.1} parent=1 // pred_check_branch
      %160 = sbr.rel (0) target = $region17
    $region16: #{tpu_custom_call.1} parent=1 // pred_region
      %161 = dma.done [#allocation3], 256
    $region17: #{tpu_custom_call.1} parent=1 // pred_fallthru
      _
    %162 = vsyncpa [#allocation3], 1

</llo_original>
